<compile_context>
chip_gen: v5e
topology: v5e:2x2
jax: 0.10.0
libtpu: 0.0.40
codegen_flags: <defaults>
</compile_context>

<pallas_src>
import jax
import jax.numpy as jnp
from jax.experimental import pallas as pl
from jax.experimental.pallas import tpu as pltpu


def _round_up(n: int, m: int) -> int:
    return ((n + m - 1) // m) * m


def mlp_kernel(x_ref, w1_ref, b1_ref, w2_ref, b2_ref, o_ref):
    # x_ref : (TB, D_IN) f32/bf16  (cast to bf16 here, right before the dot)
    # w1_ref: (D_IN, H)  bf16      (VMEM-resident across grid steps)
    # b1_ref: (1, H)     f32
    # w2_ref: (1, H)     f32       (layer-2 weights, used on the VPU)
    # b2_ref: (1,)       f32, SMEM scalar
    # o_ref : (1, TB)    f32       (batch on the lane axis -> lane-dense store)
    x = x_ref[...].astype(jnp.bfloat16)                     # in-kernel cast
    h = jnp.dot(x, w1_ref[...],
                preferred_element_type=jnp.float32)         # MXU, f32 accum
    h = jnp.maximum(h + b1_ref[...], 0.0)                   # bias + ReLU (VPU)

    # Layer 2 (H -> 1): elementwise multiply + lane reduction (VPU/XLU)
    # instead of an N=1 MXU matmul.
    z = jnp.sum(h * w2_ref[...], axis=-1) + b2_ref[0]       # (TB,)

    # Numerically-stable sigmoid: exp of a non-positive argument (EUP),
    # one select + one divide (VPU).  Never overflows.
    e = jnp.exp(-jnp.abs(z))
    sig = jnp.where(z >= 0.0, 1.0, e) / (1.0 + e)
    o_ref[...] = sig.reshape(1, -1).astype(o_ref.dtype)


def _choose_batch_tile(B: int, tb_max: int, num_cores: int = 2):
    """Pick (TB, num_tiles) for the batch grid.

    Small/moderate batches use a single full-array tile (no padding, no OOB).
    Larger batches are split into a multiple-of-`num_cores` tile count (so
    v7x's two TensorCores get balanced work), with TB a multiple of 128 for
    lane-dense output stores.
    """
    if B <= min(1024, tb_max):
        return B, 1
    num_tiles = num_cores * pl.cdiv(B, num_cores * tb_max)
    TB = _round_up(pl.cdiv(B, num_tiles), 128)
    num_tiles = pl.cdiv(B, TB)          # last tile may be ragged (reads OOB)
    return TB, num_tiles


def neural_net_forward(x, w1, b1, w2, b2, *, tb_max=4096):
    """x: (B, D_in); w1: (D_in, H); b1: (1, H); w2: (H, 1); b2: (1, 1).

    Returns sigmoid(relu(x @ w1 + b1) @ w2 + b2) with shape (B, 1), f32.
    """
    B, d_in = x.shape
    H = w1.shape[1]

    TB, num_tiles = _choose_batch_tile(B, tb_max)
    B_pad = num_tiles * TB

    # Tiny parameter tensors: cheap one-off casts/reshapes in the wrapper.
    w1_bf = w1.astype(jnp.bfloat16)
    b1_row = b1.reshape(1, H).astype(jnp.float32)
    w2_row = w2.reshape(1, H).astype(jnp.float32)   # VPU path, keep f32
    b2_s = b2.reshape(1).astype(jnp.float32)        # scalar -> SMEM

    out = pl.pallas_call(
        mlp_kernel,
        out_shape=jax.ShapeDtypeStruct((1, B_pad), jnp.float32),
        grid=(num_tiles,),
        in_specs=[
            # x goes straight from HBM: no wrapper pad / cast passes.
            pl.BlockSpec((TB, d_in), lambda i: (i, 0)),
            pl.BlockSpec((d_in, H), lambda i: (0, 0)),          # VMEM-resident
            pl.BlockSpec((1, H), lambda i: (0, 0)),             # VMEM-resident
            pl.BlockSpec((1, H), lambda i: (0, 0)),             # VMEM-resident
            pl.BlockSpec(memory_space=pltpu.MemorySpace.SMEM),  # scalar b2
        ],
        out_specs=pl.BlockSpec((1, TB), lambda i: (0, i)),      # lane-dense out
        compiler_params=pltpu.CompilerParams(
            dimension_semantics=("parallel",)),                 # megacore (v7x)
    )(x, w1_bf, b1_row, w2_row, b2_s)

    # Padded tail rows (if any) carry garbage and are sliced off here.
    return out.reshape(-1)[:B].reshape(B, 1)


def reference_forward(x, w1, b1, w2, b2):
    # Matches the kernel's numerics: bf16 inputs to the first matmul with f32
    # accumulation, f32 elementwise second layer, stable sigmoid.
    h = jnp.dot(x.astype(jnp.bfloat16), w1.astype(jnp.bfloat16),
                preferred_element_type=jnp.float32) + b1
    h = jnp.maximum(h, 0.0)
    z = jnp.sum(h * w2.reshape(1, -1), axis=-1, keepdims=True) + b2.reshape(1, 1)
    return jax.nn.sigmoid(z)


if __name__ == "__main__":
    # Small shapes consistent with the module: batch=8, input_size=16, hidden=32
    B, D_IN, HIDDEN = 8, 16, 32

    key = jax.random.PRNGKey(0)
    kx, kw1, kb1, kw2, kb2 = jax.random.split(key, 5)

    x = jax.random.normal(kx, (B, D_IN), dtype=jnp.float32)

    # Deterministic PyTorch-like uniform(-1/sqrt(fan_in), +1/sqrt(fan_in)) init
    bound1 = 1.0 / (D_IN ** 0.5)
    w1 = jax.random.uniform(kw1, (D_IN, HIDDEN), jnp.float32, -bound1, bound1)
    b1 = jax.random.uniform(kb1, (1, HIDDEN), jnp.float32, -bound1, bound1)
    bound2 = 1.0 / (HIDDEN ** 0.5)
    w2 = jax.random.uniform(kw2, (HIDDEN, 1), jnp.float32, -bound2, bound2)
    b2 = jax.random.uniform(kb2, (1, 1), jnp.float32, -bound2, bound2)

    # Small-batch check (single full-array tile, no padding).
    out = jax.block_until_ready(neural_net_forward(x, w1, b1, w2, b2))
    ref = jax.block_until_ready(reference_forward(x, w1, b1, w2, b2))
    assert out.shape == (B, 1)
    assert jnp.allclose(out, ref, atol=1e-4, rtol=1e-4), "mismatch vs reference"

    # Multi-tile check: B=2304 -> 2 balanced tiles of 1152 (even tile count
    # for v7x megacore), no padding needed.
    B2 = 2304
    x2 = jax.random.normal(jax.random.PRNGKey(1), (B2, D_IN), dtype=jnp.float32)
    out2 = jax.block_until_ready(neural_net_forward(x2, w1, b1, w2, b2))
    ref2 = jax.block_until_ready(reference_forward(x2, w1, b1, w2, b2))
    assert out2.shape == (B2, 1)
    assert jnp.allclose(out2, ref2, atol=1e-4, rtol=1e-4), "mismatch (tiled)"

    # Ragged-batch check: B=1300 -> 2 tiles of 768; the last tile reads past
    # the end of x (undefined rows) and the wrapper slices the padded output.
    B3 = 1300
    x3 = jax.random.normal(jax.random.PRNGKey(2), (B3, D_IN), dtype=jnp.float32)
    out3 = jax.block_until_ready(neural_net_forward(x3, w1, b1, w2, b2))
    ref3 = jax.block_until_ready(reference_forward(x3, w1, b1, w2, b2))
    assert out3.shape == (B3, 1)
    assert jnp.allclose(out3, ref3, atol=1e-4, rtol=1e-4), "mismatch (ragged)"

    print("KERNEL_OK")
</pallas_src>

<mosaic_0001>
module attributes {stable_mosaic.version = 11 : i64} {
  func.func @mlp_kernel(%arg0: i32, %arg1: memref<8x16xf32, #tpu.memory_space<vmem>>, %arg2: memref<16x32xbf16, #tpu.memory_space<vmem>>, %arg3: memref<1x32xf32, #tpu.memory_space<vmem>>, %arg4: memref<1x32xf32, #tpu.memory_space<vmem>>, %arg5: memref<1xf32, #tpu.memory_space<smem>>, %arg6: memref<1x8xf32, #tpu.memory_space<vmem>>) attributes {dimension_semantics = [#tpu.dimension_semantics<parallel>], iteration_bounds = array<i64: 1>, scalar_prefetch = 0 : i64, scratch_operands = 0 : i64, tpu.core_type = #tpu.core_type<tc>, window_params = [{transform_indices = @transform_0, window_bounds = array<i64: 8, 16>}, {pipeline_mode = #tpu.pipeline_mode<synchronous>, transform_indices = @transform_1, window_bounds = array<i64: 16, 32>}, {pipeline_mode = #tpu.pipeline_mode<synchronous>, transform_indices = @transform_2, window_bounds = array<i64: 1, 32>}, {pipeline_mode = #tpu.pipeline_mode<synchronous>, transform_indices = @transform_3, window_bounds = array<i64: 1, 32>}, {transform_indices = @transform_4, window_bounds = array<i64: 1>}, {transform_indices = @transform_5, window_bounds = array<i64: 1, 8>}]} {
    %c0 = arith.constant 0 : index
    %c0_0 = arith.constant 0 : index
    %0 = vector.load %arg1[%c0, %c0_0] : memref<8x16xf32, #tpu.memory_space<vmem>>, vector<8x16xf32>
    %1 = arith.truncf %0 : vector<8x16xf32> to vector<8x16xbf16>
    %c0_1 = arith.constant 0 : index
    %c0_2 = arith.constant 0 : index
    %2 = vector.load %arg2[%c0_1, %c0_2] : memref<16x32xbf16, #tpu.memory_space<vmem>>, vector<16x32xbf16>
    %cst = arith.constant dense<0.000000e+00> : vector<8x32xf32>
    %3 = tpu.matmul %1, %2, %cst {dimension_numbers = #tpu.dot_dimension_numbers<[1], [0], [0], [1], [0, 0, 1, 1], [], []>} : vector<8x16xbf16>, vector<16x32xbf16>, vector<8x32xf32> -> vector<8x32xf32>
    %c0_3 = arith.constant 0 : index
    %c0_4 = arith.constant 0 : index
    %4 = vector.load %arg3[%c0_3, %c0_4] : memref<1x32xf32, #tpu.memory_space<vmem>>, vector<1x32xf32>
    %5 = vector.broadcast %4 : vector<1x32xf32> to vector<8x32xf32>
    %6 = arith.addf %3, %5 : vector<8x32xf32>
    %cst_5 = arith.constant 0.000000e+00 : f32
    %7 = vector.broadcast %cst_5 : f32 to vector<8x32xf32>
    %8 = arith.maximumf %6, %7 : vector<8x32xf32>
    %c0_6 = arith.constant 0 : index
    %c0_7 = arith.constant 0 : index
    %9 = vector.load %arg4[%c0_6, %c0_7] : memref<1x32xf32, #tpu.memory_space<vmem>>, vector<1x32xf32>
    %10 = vector.broadcast %9 : vector<1x32xf32> to vector<8x32xf32>
    %11 = arith.mulf %8, %10 : vector<8x32xf32>
    %cst_8 = arith.constant dense<0.000000e+00> : vector<8xf32>
    %12 = vector.multi_reduction <add>, %11, %cst_8 [1] : vector<8x32xf32> to vector<8xf32>
    %c0_9 = arith.constant 0 : index
    %13 = memref.load %arg5[%c0_9] : memref<1xf32, #tpu.memory_space<smem>>
    %14 = vector.broadcast %13 : f32 to vector<8xf32>
    %15 = arith.addf %12, %14 : vector<8xf32>
    %16 = math.absf %15 : vector<8xf32>
    %cst_10 = arith.constant 0.000000e+00 : f32
    %17 = vector.broadcast %cst_10 : f32 to vector<8xf32>
    %18 = arith.subf %17, %16 : vector<8xf32>
    %19 = math.exp %18 : vector<8xf32>
    %cst_11 = arith.constant 0.000000e+00 : f32
    %20 = vector.broadcast %cst_11 : f32 to vector<8xf32>
    %21 = arith.cmpf oge, %15, %20 : vector<8xf32>
    %cst_12 = arith.constant 1.000000e+00 : f32
    %22 = vector.broadcast %cst_12 : f32 to vector<8xf32>
    %23 = arith.select %21, %22, %19 : vector<8xi1>, vector<8xf32>
    %cst_13 = arith.constant 1.000000e+00 : f32
    %24 = vector.broadcast %cst_13 : f32 to vector<8xf32>
    %25 = arith.addf %24, %19 : vector<8xf32>
    %26 = arith.divf %23, %25 : vector<8xf32>
    %27 = vector.shape_cast %26 : vector<8xf32> to vector<1x8xf32>
    %c0_14 = arith.constant 0 : index
    %c0_15 = arith.constant 0 : index
    %28 = vector.load %arg6[%c0_14, %c0_15] : memref<1x8xf32, #tpu.memory_space<vmem>>, vector<1x8xf32>
    tpu.vector_store %arg6[%c0_14, %c0_15], %27 {strides = array<i32>} : memref<1x8xf32, #tpu.memory_space<vmem>>, vector<1x8xf32>,
    return
  }
  func.func @transform_0(%arg0: i32) -> (i32, i32) {
    %c0_i32 = arith.constant 0 : i32
    %c0_i32_0 = arith.constant 0 : i32
    return %arg0, %c0_i32 : i32, i32
  }
  func.func @transform_1(%arg0: i32) -> (i32, i32) {
    %c0_i32 = arith.constant 0 : i32
    %c0_i32_0 = arith.constant 0 : i32
    %c0_i32_1 = arith.constant 0 : i32
    return %c0_i32, %c0_i32_0 : i32, i32
  }
  func.func @transform_2(%arg0: i32) -> (i32, i32) {
    %c0_i32 = arith.constant 0 : i32
    %c0_i32_0 = arith.constant 0 : i32
    %c0_i32_1 = arith.constant 0 : i32
    return %c0_i32, %c0_i32_0 : i32, i32
  }
  func.func @transform_3(%arg0: i32) -> (i32, i32) {
    %c0_i32 = arith.constant 0 : i32
    %c0_i32_0 = arith.constant 0 : i32
    %c0_i32_1 = arith.constant 0 : i32
    return %c0_i32, %c0_i32_0 : i32, i32
  }
  func.func @transform_4(%arg0: i32) -> i32 {
    %c0_i32 = arith.constant 0 : i32
    %c0_i32_0 = arith.constant 0 : i32
    return %c0_i32 : i32
  }
  func.func @transform_5(%arg0: i32) -> (i32, i32) {
    %c0_i32 = arith.constant 0 : i32
    %c0_i32_0 = arith.constant 0 : i32
    return %c0_i32, %arg0 : i32, i32
  }
}

</mosaic_0001>

<llo_original>
// kernel: tpu_custom_call.1
$region0: #{tpu_custom_call.1}
  #allocation0 [shape = 'u32[]', space=smem, size = 0x4, offset = 0x4, fixed_abs, tag = 'smem constant byte address 0x4 - core index']
  #allocation1 [shape = 'u32[72,128]{1,0:T(1,128)}', space=vmem, size = 0x9000, scoped, tag = 'internal scratch']
  #allocation2 [shape = 'f32[1]{0:T(128)S(6)}', space=smem, size = 0x200, scoped, tag = 'scoped memory for tpu_custom_call.1']
  %s0 = inlined_call_operand.hbm [shape: f32[8,16], index: 0, kind: input, shape index: {}]
  %s1 = inlined_call_operand.hbm [shape: bf16[16,32], index: 1, kind: input, shape index: {}]
  %s2 = inlined_call_operand.vmem [shape: f32[1,32], index: 2, kind: input, shape index: {}]
  %s3 = inlined_call_operand.vmem [shape: f32[1,32], index: 3, kind: input, shape index: {}]
  %s4 = inlined_call_operand.<no memory space> [shape: f32[1], index: 4, kind: input, shape index: {}]
  %s5 = inlined_call_operand.hbm [shape: f32[1,8], index: 5, kind: output, shape index: {}]
  %s6 = sld [smem:[#allocation0]]
  $region38: #{tpu_custom_call.1} parent=0
    _
  %s8 = ssub.s32 1, %s6
  %s9 = scalar_select 0, %s8, %s6
  %10 = sst [smem:[#allocation2]] %s4
  $region1: #{tpu_custom_call.1} parent=0
    #allocation3 [shape = 'u8[4096]{0}', space=vmem, size = 0x1000, scoped, tag = 'input window, operand 0, single buffered']
    #allocation4 [shape = 's32[1]{0}', space=sflag, size = 0x4, scoped, tag = 'scoped memory for tpu_custom_call.1']
    #allocation5 [shape = 's32[1]{0}', space=sflag, size = 0x4, scoped, tag = 'scoped memory for tpu_custom_call.1']
    #allocation6 [shape = 'u8[4096]{0}', space=vmem, size = 0x1000, scoped, tag = 'input window, operand 1, single buffered']
    #allocation7 [shape = 's32[1]{0}', space=sflag, size = 0x4, scoped, tag = 'scoped memory for tpu_custom_call.1']
    #allocation8 [shape = 'u8[512]{0}', space=vmem, size = 0x400, scoped, tag = 'output window, operand 0, single buffered']
    %11 = vsyncpa [#allocation4], 0
    %12 = vsyncpa [#allocation7], 0
    %13 = vsyncpa [#allocation5], 0
    // Predicated region
    $region2: #{tpu_custom_call.1} parent=1 // pred_check
      _
    $region3: #{tpu_custom_call.1} parent=1 // pred_check_branch
      %15 = sbr.rel (0) target = $region5
    $region4: #{tpu_custom_call.1} parent=1 // pred_region
      %17 = vsyncadd [#allocation4], 0
      %s19 = sshll.u32 %s0, 4
      %s20 = int_to_ptr.hbm [resolvable:$true] %s19
      %s21 = sshll.u32 [#allocation3], 4
      %s22 = int_to_ptr.vmem [resolvable:$true] %s21
      %24 = dma.hbm_to_vmem [thread:$0]  %s20, 128, %s22, [#allocation4]
    $region5: #{tpu_custom_call.1} parent=1 // pred_fallthru
      _
    // Predicated region
    $region6: #{tpu_custom_call.1} parent=1 // pred_check
      _
    $region7: #{tpu_custom_call.1} parent=1 // pred_check_branch
      %26 = sbr.rel (0) target = $region9
    $region8: #{tpu_custom_call.1} parent=1 // pred_region
      %28 = vsyncadd [#allocation7], 0
      %s29 = sshll.u32 %s1, 4
      %s30 = int_to_ptr.hbm [resolvable:$true] %s29
      %s31 = sshll.u32 [#allocation6], 4
      %s32 = int_to_ptr.vmem [resolvable:$true] %s31
      %37 = dma.hbm_to_vmem [thread:$0]  %s30, 128, %s32, [#allocation7], 64, 64, 4
    $region9: #{tpu_custom_call.1} parent=1 // pred_fallthru
      _
    // Predicated region
    $region10: #{tpu_custom_call.1} parent=1 // pred_check
      _
    $region11: #{tpu_custom_call.1} parent=1 // pred_check_branch
      %39 = sbr.rel (0) target = $region13
    $region12: #{tpu_custom_call.1} parent=1 // pred_region
      _
    $region13: #{tpu_custom_call.1} parent=1 // pred_fallthru
      _
    // Predicated region
    $region14: #{tpu_custom_call.1} parent=1 // pred_check
      _
    $region15: #{tpu_custom_call.1} parent=1 // pred_check_branch
      %41 = sbr.rel (0) target = $region17
    $region16: #{tpu_custom_call.1} parent=1 // pred_region
      _
    $region17: #{tpu_custom_call.1} parent=1 // pred_fallthru
      _
    // Predicated region
    $region18: #{tpu_custom_call.1} parent=1 // pred_check
      _
    $region19: #{tpu_custom_call.1} parent=1 // pred_check_branch
      %43 = sbr.rel (0) target = $region21
    $region20: #{tpu_custom_call.1} parent=1 // pred_region
      _
    $region21: #{tpu_custom_call.1} parent=1 // pred_fallthru
      _
    // Predicated region
    $region22: #{tpu_custom_call.1} parent=1 // pred_check
      _
    $region23: #{tpu_custom_call.1} parent=1 // pred_check_branch
      %45 = sbr.rel (0) target = $region25
    $region24: #{tpu_custom_call.1} parent=1 // pred_region
      %47 = dma.done [#allocation4], 128
    $region25: #{tpu_custom_call.1} parent=1 // pred_fallthru
      _
    // Predicated region
    $region26: #{tpu_custom_call.1} parent=1 // pred_check
      _
    $region27: #{tpu_custom_call.1} parent=1 // pred_check_branch
      %49 = sbr.rel (0) target = $region29
    $region28: #{tpu_custom_call.1} parent=1 // pred_region
      %51 = dma.done [#allocation7], 128
    $region29: #{tpu_custom_call.1} parent=1 // pred_fallthru
      _
    %v53 = vld [vmem:[#allocation3] sm:$0xff]
    %v54 = vpack.c.bf16 %v53, %v53
    %v55 = vld [vmem:[#allocation6] sm:$0xf]
    %v56 = vld [vmem:[#allocation6 + $0x4] sm:$0xf]
    %v57 = vld [vmem:[%s2] sm:$0x1]
    %v59 = vperm.slane %v57, 0
    %v63 = vunpack.c.l.b16 %v55
    %v64 = vunpack.c.l.b16 %v56
    %v65 = vpack.c.b16 %v64, %v63
    %vm67 = vcmask 130048
    %v69 = vsel %vm67, %v54, 0
    %71 = vmatpush.bf16.msra.mxu0 0
    %72 = vmatpush.bf16.msra.mxu0 0
    %73 = vmatpush.bf16.msra.mxu0 0
    %74 = vmatpush.bf16.msra.mxu0 0
    %75 = vmatpush.bf16.msra.mxu0 0
    %76 = vmatpush.bf16.msra.mxu0 0
    %77 = vmatpush.bf16.msra.mxu0 0
    %78 = vmatpush.bf16.msra.mxu0 %v65
    %79 = vmatmul.bf16.gmra.mxu0 %v69
    %v80 = vpop.f32.mrf.mxu0
    %v81 = vadd.f32 %v59, %v80
    %v82 = vpop.f32.mrf.mxu0
    %83 = vdwg.mxu0
    %v84 = vmax.f32 %v81, 0.0
    %v85 = vld [vmem:[%s3] sm:$0x1]
    %v87 = vperm.slane %v85, 0
    %v89 = vmul.f32 %v84, %v87
    %vm90 = vcmask 261120
    %v91 = vsel %vm90, %v89, 0.0
    %92 = vadd.xlane.f32.xlu0 %v91
    %v93 = vpop.xlane.xlu0 %92
    %s94 = sld [smem:[#allocation2]]
    %v95 = vstv %s94
    %v96 = vadd.f32 %v93, %v95
    %v97 = vand.u32 2147483647, %v96
    %v98 = vsub.f32 0.0, %v97
    %v99 = vmul.f32 %v98, 1.442695
    %v100 = vpow.pop %v99
    %vm101 = vcmp.ge.f32.partialorder %v96, 0.0
    %v102 = vsel %vm101, 1.0, %v100
    %v103 = vadd.f32 %v100, 1.0
    %v104 = vrcp.pop %v103
    %v105 = vmul.f32 %v103, %v104
    %v106 = vsub.f32 1.0, %v105
    %v107 = vmul.f32 %v104, %v106
    %v108 = vadd.f32 %v104, %v107
    %vm109 = vweird.f32 %v103
    %vm110 = vweird.f32 %v104
    %vm111 = vmor %vm109, %vm110
    %v112 = vsel %vm111, %v104, %v108
    %v113 = vand.u32 2147483647, %v103
    %vm114 = vcmp.eq.f32.partialorder %v113, 8.507059e+37
    %v115 = vand.u32 %v103, 2147483648
    %v116 = vor.u32 1.1754944e-38, %v115
    %v117 = vsel %vm114, %v116, %v112
    %v118 = vmul.f32 %v102, %v117
    %v120 = vlaneseq
    %v121 = vand.u32 %v120, 127
    %v122 = vperm.slane %v118, %v121
    %vm124 = vcmask 57344
    %125 = vst.msk [vmem:[#allocation8] sm:$0x1] %vm124, %v122
    // Predicated region
    $region30: #{tpu_custom_call.1} parent=1 // pred_check
      _
    $region31: #{tpu_custom_call.1} parent=1 // pred_check_branch
      %127 = sbr.rel (0) target = $region33
    $region32: #{tpu_custom_call.1} parent=1 // pred_region
      %129 = vsyncadd [#allocation5], 0
      %s131 = sshll.u32 [#allocation8], 4
      %s132 = int_to_ptr.vmem [resolvable:$true] %s131
      %s133 = sshll.u32 %s5, 4
      %s134 = int_to_ptr.hbm [resolvable:$true] %s133
      %136 = dma.vmem_to_hbm [thread:$0]  %s132, 16, %s134, [#allocation5]
    $region33: #{tpu_custom_call.1} parent=1 // pred_fallthru
      _
    // Predicated region
    $region34: #{tpu_custom_call.1} parent=1 // pred_check
      _
    $region35: #{tpu_custom_call.1} parent=1 // pred_check_branch
      %138 = sbr.rel (0) target = $region37
    $region36: #{tpu_custom_call.1} parent=1 // pred_region
      %140 = dma.done [#allocation5], 16
    $region37: #{tpu_custom_call.1} parent=1 // pred_fallthru
      _
    %141 = vsyncpa [#allocation4], 1
    %142 = vsyncpa [#allocation7], 1
    %143 = vsyncpa [#allocation5], 1

</llo_original>
